<compile_context>
chip_gen: v6e
topology: v6e:2x2x1
jax: 0.10.0
libtpu: 0.0.40
codegen_flags: <defaults>
</compile_context>

<pallas_src>
import math

import jax
import jax.numpy as jnp
from jax.experimental import pallas as pl
from jax.experimental.pallas import tpu as pltpu

_LANE = 128
_SUBLANE = 8
_TARGET_BLOCK_BYTES = 4 * 1024 * 1024   # ~4 MiB per block
_MAX_LANE_WIDTH = 4096                  # widest lane-dense slab to try
_VMEM_LIMIT_BYTES = 32 * 1024 * 1024    # explicit; safe on v5e/v6e/v7x


def _copy_kernel(x_ref, o_ref):
    # Identity copy of the current (tile_rows, w) block.
    o_ref[...] = x_ref[...]


def _choose_lane_width(n):
    """Largest power-of-two multiple of 128 (<= _MAX_LANE_WIDTH) dividing n."""
    w = _MAX_LANE_WIDTH
    while w >= _LANE:
        if n % w == 0:
            return w
        w //= 2
    return None


def _pallas_identity_copy(flat):
    """HBM->VMEM->HBM identity copy of a 1-D buffer via a tiled Pallas kernel."""
    n = flat.shape[0]
    if n == 0:
        return flat

    w = _choose_lane_width(n)
    pad = 0
    if w is None:
        # Rare path: n not a multiple of 128 -> minimal pad (< 128 elements).
        pad = (-n) % _LANE
        flat = jnp.pad(flat, (0, pad))
        w = _LANE
    n_padded = n + pad
    rows = n_padded // w
    x2d = flat.reshape(rows, w)

    itemsize = jnp.dtype(flat.dtype).itemsize
    # Rows per block: aim for ~_TARGET_BLOCK_BYTES, multiple of the sublane count.
    tile_rows = max(
        _SUBLANE,
        (_TARGET_BLOCK_BYTES // (w * itemsize)) // _SUBLANE * _SUBLANE,
    )
    if rows <= tile_rows:
        # Single block equal to the full array dims (always a legal block shape).
        tile_rows = rows
        grid = (1,)
    else:
        # Non-divisible edge blocks are masked by Pallas -> no wrapper pad/slice.
        grid = (pl.cdiv(rows, tile_rows),)

    out = pl.pallas_call(
        _copy_kernel,
        out_shape=jax.ShapeDtypeStruct((rows, w), flat.dtype),
        grid_spec=pltpu.PrefetchScalarGridSpec(
            num_scalar_prefetch=0,
            grid=grid,
            in_specs=[pl.BlockSpec((tile_rows, w), lambda i: (i, 0))],
            out_specs=pl.BlockSpec((tile_rows, w), lambda i: (i, 0)),
        ),
        compiler_params=pltpu.CompilerParams(
            dimension_semantics=("parallel",),
            vmem_limit_bytes=_VMEM_LIMIT_BYTES,
        ),
        cost_estimate=pl.CostEstimate(
            flops=0,
            transcendentals=0,
            bytes_accessed=2 * n_padded * itemsize,
        ),
    )(x2d)

    out_flat = out.reshape(-1)
    if pad:
        out_flat = out_flat[:n]
    return out_flat


class View:
    """Pallas equivalent of SENN View: reshape to `dim` (supports -1).

    By default the reshape is metadata-only (jnp.reshape), matching torch
    .view() semantics (no data movement).  Pass force_materialize=True to
    route the data through the Pallas identity-copy kernel (physical HBM
    copy); the result is numerically identical either way.
    """

    def __init__(self, *dim, force_materialize=False):
        self.dim = dim
        self.force_materialize = force_materialize

    def _resolve_dim(self, total):
        dims = list(self.dim)
        if -1 in dims:
            idx = dims.index(-1)
            known = 1
            for j, d in enumerate(dims):
                if j != idx:
                    known *= d
            dims[idx] = total // known
        assert math.prod(dims) == total, "View dims incompatible with input size"
        return tuple(dims)

    def __call__(self, x):
        total = math.prod(x.shape)
        target = self._resolve_dim(total)
        if not self.force_materialize:
            # Highest-value path: reshape is metadata-only in XLA.
            return jnp.reshape(x, target)
        flat = jnp.reshape(x, (-1,))          # row-major flatten (glue)
        copied = _pallas_identity_copy(flat)  # hot path: Pallas identity copy
        return jnp.reshape(copied, target)    # apply target shape (glue)


if __name__ == "__main__":
    key = jax.random.PRNGKey(0)
    # Typical SENN usage: View(-1, C*H*W) flattening conv features.
    x = jax.random.normal(key, (2, 4, 16, 16), dtype=jnp.float32)

    ref = jnp.reshape(x, (2, 1024))

    # Default (metadata-only) path — matches torch .view semantics.
    y_fast = View(2, -1)(x)
    y_fast = jax.block_until_ready(y_fast)
    assert y_fast.shape == (2, 1024), y_fast.shape
    assert jnp.array_equal(y_fast, ref), "mismatch vs reference reshape (fast path)"

    # Pallas identity-copy path (exercises the kernel).
    y_kernel = View(2, -1, force_materialize=True)(x)
    y_kernel = jax.block_until_ready(y_kernel)
    assert y_kernel.shape == (2, 1024), y_kernel.shape
    assert jnp.array_equal(y_kernel, ref), "mismatch vs reference reshape (kernel path)"

    # Also check the -1-in-front flattening form used inside SENN Sequentials.
    y_flat = View(-1, 1024, force_materialize=True)(x)
    y_flat = jax.block_until_ready(y_flat)
    assert y_flat.shape == (2, 1024), y_flat.shape
    assert jnp.array_equal(y_flat, ref), "mismatch vs reference reshape (-1 front)"

    print("KERNEL_OK")
</pallas_src>

<mosaic_0001>
module attributes {stable_mosaic.version = 11 : i64} {
  func.func @_copy_kernel(%arg0: i32, %arg1: memref<1x2048xf32, #tpu.memory_space<vmem>>, %arg2: memref<1x2048xf32, #tpu.memory_space<vmem>>) attributes {dimension_semantics = [#tpu.dimension_semantics<parallel>], iteration_bounds = array<i64: 1>, scalar_prefetch = 0 : i64, scratch_operands = 0 : i64, tpu.core_type = #tpu.core_type<tc>, window_params = [{transform_indices = @transform_0, window_bounds = array<i64: 1, 2048>}, {transform_indices = @transform_1, window_bounds = array<i64: 1, 2048>}]} {
    %c0 = arith.constant 0 : index
    %c0_0 = arith.constant 0 : index
    %0 = vector.load %arg1[%c0, %c0_0] : memref<1x2048xf32, #tpu.memory_space<vmem>>, vector<1x2048xf32>
    %c0_1 = arith.constant 0 : index
    %c0_2 = arith.constant 0 : index
    %1 = vector.load %arg2[%c0_1, %c0_2] : memref<1x2048xf32, #tpu.memory_space<vmem>>, vector<1x2048xf32>
    tpu.vector_store %arg2[%c0_1, %c0_2], %0 {strides = array<i32>} : memref<1x2048xf32, #tpu.memory_space<vmem>>, vector<1x2048xf32>,
    return
  }
  func.func @transform_0(%arg0: i32) -> (i32, i32) {
    %c0_i32 = arith.constant 0 : i32
    %c0_i32_0 = arith.constant 0 : i32
    return %arg0, %c0_i32 : i32, i32
  }
  func.func @transform_1(%arg0: i32) -> (i32, i32) {
    %c0_i32 = arith.constant 0 : i32
    %c0_i32_0 = arith.constant 0 : i32
    return %arg0, %c0_i32 : i32, i32
  }
}

</mosaic_0001>

<llo_original>
// kernel: tpu_custom_call.1
$region0: #{tpu_custom_call.1}
  #allocation0 [shape = 'u32[]', space=smem, size = 0x4, offset = 0x4, fixed_abs, tag = 'smem constant byte address 0x4 - core index']
  #allocation1 [shape = 'u32[144,128]{1,0:T(1,128)}', space=vmem, size = 0x12000, scoped, tag = 'internal scratch']
  %s0 = inlined_call_operand.hbm [shape: f32[1,2048], index: 0, kind: input, shape index: {}]
  %s1 = inlined_call_operand.hbm [shape: f32[1,2048], index: 1, kind: output, shape index: {}]
  %s2 = sld [smem:[#allocation0]]
  $region18: #{tpu_custom_call.1} parent=0
    _
  %s4 = ssub.s32 1, %s2
  %s5 = scalar_select 0, %s4, %s2
  $region1: #{tpu_custom_call.1} parent=0
    #allocation2 [shape = 'u8[8192]{0}', space=vmem, size = 0x2000, scoped, tag = 'input window, operand 0, single buffered']
    #allocation3 [shape = 's32[1]{0}', space=sflag, size = 0x4, scoped, tag = 'scoped memory for tpu_custom_call.1']
    #allocation4 [shape = 's32[1]{0}', space=sflag, size = 0x4, scoped, tag = 'scoped memory for tpu_custom_call.1']
    #allocation5 [shape = 'u8[8192]{0}', space=vmem, size = 0x2000, scoped, tag = 'output window, operand 0, single buffered']
    %6 = vsyncpa [#allocation3], 0
    %7 = vsyncpa [#allocation4], 0
    // Predicated region
    $region2: #{tpu_custom_call.1} parent=1 // pred_check
      _
    $region3: #{tpu_custom_call.1} parent=1 // pred_check_branch
      %9 = sbr.rel (0) target = $region5
    $region4: #{tpu_custom_call.1} parent=1 // pred_region
      %s11 = ssub.s32 256, 256
      %12 = vsyncadd [#allocation3], %s11
      %s14 = sshll.u32 [#allocation2], 4
      %s15 = int_to_ptr.vmem [resolvable:$true] %s14
      %17 = dma.hbm_to_vmem [thread:$0]  %s0, 256, %s15, [#allocation3]
    $region5: #{tpu_custom_call.1} parent=1 // pred_fallthru
      _
    // Predicated region
    $region6: #{tpu_custom_call.1} parent=1 // pred_check
      _
    $region7: #{tpu_custom_call.1} parent=1 // pred_check_branch
      %19 = sbr.rel (0) target = $region9
    $region8: #{tpu_custom_call.1} parent=1 // pred_region
      %20 = dma.done [#allocation3], 256
    $region9: #{tpu_custom_call.1} parent=1 // pred_fallthru
      _
    %v21 = vld [vmem:[#allocation2] sm:$0xff]
    %v22 = vld [vmem:[#allocation2 + $0x8] sm:$0xff]
    %23 = vst [vmem:[#allocation5] sm:$0xff] %v21
    %24 = vst [vmem:[#allocation5 + $0x8] sm:$0xff] %v22
    // Predicated region
    $region10: #{tpu_custom_call.1} parent=1 // pred_check
      _
    $region11: #{tpu_custom_call.1} parent=1 // pred_check_branch
      %26 = sbr.rel (0) target = $region13
    $region12: #{tpu_custom_call.1} parent=1 // pred_region
      %s28 = ssub.s32 256, 256
      %29 = vsyncadd [#allocation4], %s28
      %s31 = sshll.u32 [#allocation5], 4
      %s32 = int_to_ptr.vmem [resolvable:$true] %s31
      %34 = dma.vmem_to_hbm [thread:$0]  %s32, 256, %s1, [#allocation4]
    $region13: #{tpu_custom_call.1} parent=1 // pred_fallthru
      _
    // Predicated region
    $region14: #{tpu_custom_call.1} parent=1 // pred_check
      _
    $region15: #{tpu_custom_call.1} parent=1 // pred_check_branch
      %36 = sbr.rel (0) target = $region17
    $region16: #{tpu_custom_call.1} parent=1 // pred_region
      %37 = dma.done [#allocation4], 256
    $region17: #{tpu_custom_call.1} parent=1 // pred_fallthru
      _
    %38 = vsyncpa [#allocation3], 1
    %39 = vsyncpa [#allocation4], 1

</llo_original>
